<compile_context>
chip_gen: v7x
topology: tpu7x:2x2x1
jax: 0.10.0
libtpu: 0.0.40
codegen_flags: <defaults>
</compile_context>

<pallas_src>
import jax
import jax.numpy as jnp
from jax.experimental import pallas as pl
from jax.experimental.pallas import tpu as pltpu


def _round_up(x, m):
    return ((x + m - 1) // m) * m


def _choose_tiling(n8):
    """Pick (tile_rows, padded_rows). n8 is the batch rounded up to 8."""
    if n8 <= 512:
        return n8, n8                      # one tile: minimal per-step overhead
    n_tiles = 2                            # even tile count -> both v7x TCs busy
    while True:
        tile = _round_up(-(-n8 // n_tiles), 8)
        if tile <= 1024:
            return tile, tile * n_tiles
        n_tiles += 2


def _edge_rnn_kernel(inp_ref, hc_ref, w_enc_ref, b_enc_ref, w_ih_ref,
                     w_hh_ref, b_g_ref, scale_ref, offset_ref, out_ref):
    """One row-tile: Linear -> ReLU -> (Dropout=id) -> LSTMCell."""
    H = hc_ref.shape[-1] // 2
    mm = w_ih_ref.dtype                    # bf16 (or f32) MXU operand dtype

    x = inp_ref[...]                       # (Tn, D_in) f32
    d_in = x.shape[-1]

    # --- encoder: Linear + ReLU --------------------------------------------
    if d_in <= 8:
        # tiny K: VPU broadcast-FMAs (exact f32, no MXU push/pop latency)
        w_enc = w_enc_ref[...]             # (D_in, E) f32
        enc = x[:, 0:1] * w_enc[0:1, :]
        for k in range(1, d_in):           # static, D_in small
            enc = enc + x[:, k:k + 1] * w_enc[k:k + 1, :]
    else:
        enc = jnp.dot(x.astype(mm), w_enc_ref[...].astype(mm),
                      preferred_element_type=jnp.float32)
    enc = jnp.maximum(enc + b_enc_ref[...], 0.0)          # (Tn, E) f32
    # TODO(synk): nn.Dropout treated as eval-mode identity (no PRNG mask).

    hc = hc_ref[...]                       # (Tn, 2H) f32
    h_prev = hc[:, :H]
    c_prev = hc[:, H:]

    # --- LSTM gates: two resident-weight MXU dots, f32 accumulate ----------
    gates = (jnp.dot(enc.astype(mm), w_ih_ref[...],
                     preferred_element_type=jnp.float32)
             + jnp.dot(h_prev.astype(mm), w_hh_ref[...],
                       preferred_element_type=jnp.float32)
             + b_g_ref[...])               # (Tn, 4H) f32, gate order i,f,g,o

    # --- single-sigmoid activations: tanh(x) = 2*sigmoid(2x) - 1 -----------
    # (g-gate columns of w_ih/w_hh/b were pre-scaled by 2 in fuse_params)
    s = jax.nn.sigmoid(gates)              # one EUP pass over full width
    act = s * scale_ref[...] + offset_ref[...]   # [si | sf | tanh(g) | so]

    i_a = act[:, 0 * H:1 * H]
    f_a = act[:, 1 * H:2 * H]
    g_a = act[:, 2 * H:3 * H]
    o_a = act[:, 3 * H:4 * H]

    c_new = f_a * c_prev + i_a * g_a
    h_new = o_a * jnp.tanh(c_new)

    out_ref[:, :H] = h_new.astype(out_ref.dtype)
    out_ref[:, H:] = c_new.astype(out_ref.dtype)


def _edge_rnn_pallas(inp_p, hc_p, fused, tile_n):
    """Packed entry point: inp_p (n_pad, D_in) f32, hc_p (n_pad, 2H) f32.

    n_pad must be a multiple of tile_n (and of 8).  Returns the new
    (n_pad, 2H) [h | c] slab, aliased onto hc_p's buffer.
    """
    n_pad, d_in = inp_p.shape
    H2 = hc_p.shape[-1]
    E = fused["w_enc"].shape[-1]
    H4 = fused["w_ih"].shape[-1]
    grid = (n_pad // tile_n,)

    return pl.pallas_call(
        _edge_rnn_kernel,
        out_shape=jax.ShapeDtypeStruct((n_pad, H2), jnp.float32),
        grid_spec=pltpu.PrefetchScalarGridSpec(
            num_scalar_prefetch=0,
            grid=grid,
            in_specs=[
                pl.BlockSpec((tile_n, d_in), lambda i: (i, 0)),   # inp rows
                pl.BlockSpec((tile_n, H2), lambda i: (i, 0)),     # [h|c] rows
                pl.BlockSpec((d_in, E), lambda i: (0, 0)),        # w_enc (resident)
                pl.BlockSpec((1, E), lambda i: (0, 0)),           # b_enc
                pl.BlockSpec((E, H4), lambda i: (0, 0)),          # w_ih (resident)
                pl.BlockSpec((H2 // 2, H4), lambda i: (0, 0)),    # w_hh (resident)
                pl.BlockSpec((1, H4), lambda i: (0, 0)),          # fused bias
                pl.BlockSpec((1, H4), lambda i: (0, 0)),          # sigma scale row
                pl.BlockSpec((1, H4), lambda i: (0, 0)),          # sigma offset row
            ],
            out_specs=pl.BlockSpec((tile_n, H2), lambda i: (i, 0)),
        ),
        # state output reuses the state input's HBM buffer
        input_output_aliases={1: 0},
        compiler_params=pltpu.CompilerParams(
            dimension_semantics=("parallel",)),
    )(inp_p, hc_p, fused["w_enc"], fused["b_enc"], fused["w_ih"],
      fused["w_hh"], fused["b_g"], fused["scale"], fused["offset"])


def human_obstacle_edge_rnn(inp, h, c, fused):
    """Convenience wrapper matching the PyTorch forward signature.

    inp: (N, D_in); h, c: (N, H) -> (h_new, c_new).  For repeated stepping,
    keep the padded (n_pad, 2H) slab and call _edge_rnn_pallas directly to
    avoid the pad/concat/slice HBM round-trips done here.
    """
    N = inp.shape[0]
    H = h.shape[-1]
    n8 = _round_up(max(N, 8), 8)
    tile_n, n_pad = _choose_tiling(n8)

    inp_p = jnp.pad(inp.astype(jnp.float32), ((0, n_pad - N), (0, 0)))
    hc_p = jnp.pad(jnp.concatenate([h, c], axis=-1).astype(jnp.float32),
                   ((0, n_pad - N), (0, 0)))

    out = _edge_rnn_pallas(inp_p, hc_p, fused, tile_n)
    return out[:N, :H], out[:N, H:]


def init_params(key, input_size, embedding_size, rnn_size):
    """Deterministic synthetic parameters (shapes match the PyTorch module)."""
    ks = jax.random.split(key, 6)
    scale = 0.1
    return {
        # encoder_linear: nn.Linear(input_size, embedding_size)
        "w_enc": scale * jax.random.normal(ks[0], (input_size, embedding_size), jnp.float32),
        "b_enc": scale * jax.random.normal(ks[1], (1, embedding_size), jnp.float32),
        # cell: nn.LSTMCell(embedding_size, rnn_size); gate order i,f,g,o
        "w_ih": scale * jax.random.normal(ks[2], (embedding_size, 4 * rnn_size), jnp.float32),
        "b_ih": scale * jax.random.normal(ks[3], (1, 4 * rnn_size), jnp.float32),
        "w_hh": scale * jax.random.normal(ks[4], (rnn_size, 4 * rnn_size), jnp.float32),
        "b_hh": scale * jax.random.normal(ks[5], (1, 4 * rnn_size), jnp.float32),
    }


def fuse_params(params, use_bf16=True):
    """One-time prep (f32): fuse biases, pre-scale g-gate columns by 2 for the
    tanh(x)=2*sigmoid(2x)-1 trick, build the post-sigmoid affine rows, and
    cast MXU operands."""
    mm = jnp.bfloat16 if use_bf16 else jnp.float32
    H = params["w_hh"].shape[0]
    ones = jnp.ones((H,), jnp.float32)
    zeros = jnp.zeros((H,), jnp.float32)
    col_scale = jnp.concatenate([ones, ones, 2.0 * ones, ones])[None, :]   # (1,4H)
    offset = jnp.concatenate([zeros, zeros, -ones, zeros])[None, :]        # (1,4H)

    w_ih = params["w_ih"] * col_scale
    w_hh = params["w_hh"] * col_scale
    b_g = (params["b_ih"] + params["b_hh"]) * col_scale

    return {
        "w_enc": params["w_enc"].astype(jnp.float32),   # VPU encoder path: f32
        "b_enc": params["b_enc"].astype(jnp.float32),
        "w_ih": w_ih.astype(mm),
        "w_hh": w_hh.astype(mm),
        "b_g": b_g.astype(jnp.float32),
        "scale": col_scale,                              # act = sigma*scale+offset
        "offset": offset,
    }


def reference_forward(inp, h, c, params):
    """Pure-JAX f32 reference of the PyTorch forward (dropout = identity)."""
    enc = jnp.maximum(inp @ params["w_enc"] + params["b_enc"], 0.0)
    gates = enc @ params["w_ih"] + params["b_ih"] + h @ params["w_hh"] + params["b_hh"]
    H = h.shape[-1]
    i = jax.nn.sigmoid(gates[:, 0 * H:1 * H])
    f = jax.nn.sigmoid(gates[:, 1 * H:2 * H])
    g = jnp.tanh(gates[:, 2 * H:3 * H])
    o = jax.nn.sigmoid(gates[:, 3 * H:4 * H])
    c_new = f * c + i * g
    h_new = o * jnp.tanh(c_new)
    return h_new, c_new


if __name__ == "__main__":
    # Small shapes consistent with the module's forward:
    #   inp: (batch, human_obstacle_edge_input_size)
    #   h,c: (batch, human_obstacle_edge_rnn_size)
    batch = 2
    input_size = 4          # args.human_obstacle_edge_input_size
    embedding_size = 32     # args.human_obstacle_edge_embedding_size
    rnn_size = 32           # args.human_obstacle_edge_rnn_size

    key = jax.random.PRNGKey(0)
    k_inp, k_h, k_c, k_par = jax.random.split(key, 4)

    inp = jax.random.normal(k_inp, (batch, input_size), jnp.float32)
    h = jax.random.normal(k_h, (batch, rnn_size), jnp.float32)
    c = jax.random.normal(k_c, (batch, rnn_size), jnp.float32)
    params = init_params(k_par, input_size, embedding_size, rnn_size)
    fused = fuse_params(params, use_bf16=True)

    fwd = jax.jit(human_obstacle_edge_rnn)

    h_new, c_new = fwd(inp, h, c, fused)
    jax.block_until_ready((h_new, c_new))

    # correctness vs pure-JAX f32 reference (bf16 MXU operands, f32 accumulate)
    h_ref, c_ref = reference_forward(inp, h, c, params)
    assert jnp.allclose(h_new, h_ref, atol=2e-2, rtol=2e-2), "h mismatch"
    assert jnp.allclose(c_new, c_ref, atol=2e-2, rtol=2e-2), "c mismatch"

    # second check: single-tile large batch (200 rows -> one 200-row tile)
    big = 200
    kb = jax.random.split(key, 3)
    inp_b = jax.random.normal(kb[0], (big, input_size), jnp.float32)
    h_b = jax.random.normal(kb[1], (big, rnn_size), jnp.float32)
    c_b = jax.random.normal(kb[2], (big, rnn_size), jnp.float32)
    hb_new, cb_new = fwd(inp_b, h_b, c_b, fused)
    jax.block_until_ready((hb_new, cb_new))
    hb_ref, cb_ref = reference_forward(inp_b, h_b, c_b, params)
    assert jnp.allclose(hb_new, hb_ref, atol=2e-2, rtol=2e-2), "h (batched) mismatch"
    assert jnp.allclose(cb_new, cb_ref, atol=2e-2, rtol=2e-2), "c (batched) mismatch"

    # third check: >512 rows -> padded, two parallel row tiles (v7x: both TCs)
    big2 = 600
    kc = jax.random.split(kb[0], 3)
    inp_c = jax.random.normal(kc[0], (big2, input_size), jnp.float32)
    h_c = jax.random.normal(kc[1], (big2, rnn_size), jnp.float32)
    c_c = jax.random.normal(kc[2], (big2, rnn_size), jnp.float32)
    hc_new, cc_new = fwd(inp_c, h_c, c_c, fused)
    jax.block_until_ready((hc_new, cc_new))
    hc_ref, cc_ref = reference_forward(inp_c, h_c, c_c, params)
    assert jnp.allclose(hc_new, hc_ref, atol=2e-2, rtol=2e-2), "h (2-tile) mismatch"
    assert jnp.allclose(cc_new, cc_ref, atol=2e-2, rtol=2e-2), "c (2-tile) mismatch"

    print("KERNEL_OK")
</pallas_src>

<mosaic_0001>
module attributes {stable_mosaic.version = 11 : i64} {
  func.func @_edge_rnn_kernel(%arg0: i32, %arg1: memref<8x4xf32, #tpu.memory_space<vmem>>, %arg2: memref<8x64xf32, #tpu.memory_space<vmem>>, %arg3: memref<4x32xf32, #tpu.memory_space<vmem>>, %arg4: memref<1x32xf32, #tpu.memory_space<vmem>>, %arg5: memref<32x128xbf16, #tpu.memory_space<vmem>>, %arg6: memref<32x128xbf16, #tpu.memory_space<vmem>>, %arg7: memref<1x128xf32, #tpu.memory_space<vmem>>, %arg8: memref<1x128xf32, #tpu.memory_space<vmem>>, %arg9: memref<1x128xf32, #tpu.memory_space<vmem>>, %arg10: memref<8x64xf32, #tpu.memory_space<vmem>>) attributes {dimension_semantics = [#tpu.dimension_semantics<parallel>], iteration_bounds = array<i64: 1>, scalar_prefetch = 0 : i64, scratch_operands = 0 : i64, tpu.core_type = #tpu.core_type<tc>, window_params = [{transform_indices = @transform_0, window_bounds = array<i64: 8, 4>}, {transform_indices = @transform_1, window_bounds = array<i64: 8, 64>}, {pipeline_mode = #tpu.pipeline_mode<synchronous>, transform_indices = @transform_2, window_bounds = array<i64: 4, 32>}, {pipeline_mode = #tpu.pipeline_mode<synchronous>, transform_indices = @transform_3, window_bounds = array<i64: 1, 32>}, {pipeline_mode = #tpu.pipeline_mode<synchronous>, transform_indices = @transform_4, window_bounds = array<i64: 32, 128>}, {pipeline_mode = #tpu.pipeline_mode<synchronous>, transform_indices = @transform_5, window_bounds = array<i64: 32, 128>}, {pipeline_mode = #tpu.pipeline_mode<synchronous>, transform_indices = @transform_6, window_bounds = array<i64: 1, 128>}, {pipeline_mode = #tpu.pipeline_mode<synchronous>, transform_indices = @transform_7, window_bounds = array<i64: 1, 128>}, {pipeline_mode = #tpu.pipeline_mode<synchronous>, transform_indices = @transform_8, window_bounds = array<i64: 1, 128>}, {transform_indices = @transform_9, window_bounds = array<i64: 8, 64>}]} {
    %c0 = arith.constant 0 : index
    %c0_0 = arith.constant 0 : index
    %0 = vector.load %arg1[%c0, %c0_0] : memref<8x4xf32, #tpu.memory_space<vmem>>, vector<8x4xf32>
    %c0_1 = arith.constant 0 : index
    %c0_2 = arith.constant 0 : index
    %1 = vector.load %arg3[%c0_1, %c0_2] : memref<4x32xf32, #tpu.memory_space<vmem>>, vector<4x32xf32>
    %2 = vector.extract_strided_slice %0 {offsets = [0, 0], sizes = [8, 1], strides = [1, 1]} : vector<8x4xf32> to vector<8x1xf32>
    %3 = vector.extract_strided_slice %1 {offsets = [0, 0], sizes = [1, 32], strides = [1, 1]} : vector<4x32xf32> to vector<1x32xf32>
    %4 = vector.broadcast %2 : vector<8x1xf32> to vector<8x32xf32>
    %5 = vector.broadcast %3 : vector<1x32xf32> to vector<8x32xf32>
    %6 = arith.mulf %4, %5 : vector<8x32xf32>
    %7 = vector.extract_strided_slice %0 {offsets = [0, 1], sizes = [8, 1], strides = [1, 1]} : vector<8x4xf32> to vector<8x1xf32>
    %8 = vector.extract_strided_slice %1 {offsets = [1, 0], sizes = [1, 32], strides = [1, 1]} : vector<4x32xf32> to vector<1x32xf32>
    %9 = vector.broadcast %7 : vector<8x1xf32> to vector<8x32xf32>
    %10 = vector.broadcast %8 : vector<1x32xf32> to vector<8x32xf32>
    %11 = arith.mulf %9, %10 : vector<8x32xf32>
    %12 = arith.addf %6, %11 : vector<8x32xf32>
    %13 = vector.extract_strided_slice %0 {offsets = [0, 2], sizes = [8, 1], strides = [1, 1]} : vector<8x4xf32> to vector<8x1xf32>
    %14 = vector.extract_strided_slice %1 {offsets = [2, 0], sizes = [1, 32], strides = [1, 1]} : vector<4x32xf32> to vector<1x32xf32>
    %15 = vector.broadcast %13 : vector<8x1xf32> to vector<8x32xf32>
    %16 = vector.broadcast %14 : vector<1x32xf32> to vector<8x32xf32>
    %17 = arith.mulf %15, %16 : vector<8x32xf32>
    %18 = arith.addf %12, %17 : vector<8x32xf32>
    %19 = vector.extract_strided_slice %0 {offsets = [0, 3], sizes = [8, 1], strides = [1, 1]} : vector<8x4xf32> to vector<8x1xf32>
    %20 = vector.extract_strided_slice %1 {offsets = [3, 0], sizes = [1, 32], strides = [1, 1]} : vector<4x32xf32> to vector<1x32xf32>
    %21 = vector.broadcast %19 : vector<8x1xf32> to vector<8x32xf32>
    %22 = vector.broadcast %20 : vector<1x32xf32> to vector<8x32xf32>
    %23 = arith.mulf %21, %22 : vector<8x32xf32>
    %24 = arith.addf %18, %23 : vector<8x32xf32>
    %c0_3 = arith.constant 0 : index
    %c0_4 = arith.constant 0 : index
    %25 = vector.load %arg4[%c0_3, %c0_4] : memref<1x32xf32, #tpu.memory_space<vmem>>, vector<1x32xf32>
    %26 = vector.broadcast %25 : vector<1x32xf32> to vector<8x32xf32>
    %27 = arith.addf %24, %26 : vector<8x32xf32>
    %cst = arith.constant 0.000000e+00 : f32
    %28 = vector.broadcast %cst : f32 to vector<8x32xf32>
    %29 = arith.maximumf %27, %28 : vector<8x32xf32>
    %c0_5 = arith.constant 0 : index
    %c0_6 = arith.constant 0 : index
    %30 = vector.load %arg2[%c0_5, %c0_6] : memref<8x64xf32, #tpu.memory_space<vmem>>, vector<8x64xf32>
    %31 = vector.extract_strided_slice %30 {offsets = [0, 0], sizes = [8, 32], strides = [1, 1]} : vector<8x64xf32> to vector<8x32xf32>
    %32 = vector.extract_strided_slice %30 {offsets = [0, 32], sizes = [8, 32], strides = [1, 1]} : vector<8x64xf32> to vector<8x32xf32>
    %33 = arith.truncf %29 : vector<8x32xf32> to vector<8x32xbf16>
    %c0_7 = arith.constant 0 : index
    %c0_8 = arith.constant 0 : index
    %34 = vector.load %arg5[%c0_7, %c0_8] : memref<32x128xbf16, #tpu.memory_space<vmem>>, vector<32x128xbf16>
    %cst_9 = arith.constant dense<0.000000e+00> : vector<8x128xf32>
    %35 = tpu.matmul %33, %34, %cst_9 {dimension_numbers = #tpu.dot_dimension_numbers<[1], [0], [0], [1], [0, 0, 1, 1], [], []>} : vector<8x32xbf16>, vector<32x128xbf16>, vector<8x128xf32> -> vector<8x128xf32>
    %36 = arith.truncf %31 : vector<8x32xf32> to vector<8x32xbf16>
    %c0_10 = arith.constant 0 : index
    %c0_11 = arith.constant 0 : index
    %37 = vector.load %arg6[%c0_10, %c0_11] : memref<32x128xbf16, #tpu.memory_space<vmem>>, vector<32x128xbf16>
    %cst_12 = arith.constant dense<0.000000e+00> : vector<8x128xf32>
    %38 = tpu.matmul %36, %37, %cst_12 {dimension_numbers = #tpu.dot_dimension_numbers<[1], [0], [0], [1], [0, 0, 1, 1], [], []>} : vector<8x32xbf16>, vector<32x128xbf16>, vector<8x128xf32> -> vector<8x128xf32>
    %39 = arith.addf %35, %38 : vector<8x128xf32>
    %c0_13 = arith.constant 0 : index
    %c0_14 = arith.constant 0 : index
    %40 = vector.load %arg7[%c0_13, %c0_14] : memref<1x128xf32, #tpu.memory_space<vmem>>, vector<1x128xf32>
    %41 = vector.broadcast %40 : vector<1x128xf32> to vector<8x128xf32>
    %42 = arith.addf %39, %41 : vector<8x128xf32>
    %43 = arith.negf %42 : vector<8x128xf32>
    %44 = math.exp %43 : vector<8x128xf32>
    %cst_15 = arith.constant 1.000000e+00 : f32
    %45 = vector.broadcast %cst_15 : f32 to vector<8x128xf32>
    %46 = arith.addf %45, %44 : vector<8x128xf32>
    %47 = arith.divf %45, %46 : vector<8x128xf32>
    %c0_16 = arith.constant 0 : index
    %c0_17 = arith.constant 0 : index
    %48 = vector.load %arg8[%c0_16, %c0_17] : memref<1x128xf32, #tpu.memory_space<vmem>>, vector<1x128xf32>
    %49 = vector.broadcast %48 : vector<1x128xf32> to vector<8x128xf32>
    %50 = arith.mulf %47, %49 : vector<8x128xf32>
    %c0_18 = arith.constant 0 : index
    %c0_19 = arith.constant 0 : index
    %51 = vector.load %arg9[%c0_18, %c0_19] : memref<1x128xf32, #tpu.memory_space<vmem>>, vector<1x128xf32>
    %52 = vector.broadcast %51 : vector<1x128xf32> to vector<8x128xf32>
    %53 = arith.addf %50, %52 : vector<8x128xf32>
    %54 = vector.extract_strided_slice %53 {offsets = [0, 0], sizes = [8, 32], strides = [1, 1]} : vector<8x128xf32> to vector<8x32xf32>
    %55 = vector.extract_strided_slice %53 {offsets = [0, 32], sizes = [8, 32], strides = [1, 1]} : vector<8x128xf32> to vector<8x32xf32>
    %56 = vector.extract_strided_slice %53 {offsets = [0, 64], sizes = [8, 32], strides = [1, 1]} : vector<8x128xf32> to vector<8x32xf32>
    %57 = vector.extract_strided_slice %53 {offsets = [0, 96], sizes = [8, 32], strides = [1, 1]} : vector<8x128xf32> to vector<8x32xf32>
    %58 = arith.mulf %55, %32 : vector<8x32xf32>
    %59 = arith.mulf %54, %56 : vector<8x32xf32>
    %60 = arith.addf %58, %59 : vector<8x32xf32>
    %61 = math.tanh %60 : vector<8x32xf32>
    %62 = arith.mulf %57, %61 : vector<8x32xf32>
    %c0_20 = arith.constant 0 : index
    %c0_21 = arith.constant 0 : index
    %63 = vector.load %arg10[%c0_20, %c0_21] : memref<8x64xf32, #tpu.memory_space<vmem>>, vector<8x32xf32>
    tpu.vector_store %arg10[%c0_20, %c0_21], %62 {strides = array<i32>} : memref<8x64xf32, #tpu.memory_space<vmem>>, vector<8x32xf32>,
    %c0_22 = arith.constant 0 : index
    %c32 = arith.constant 32 : index
    %64 = vector.load %arg10[%c0_22, %c32] : memref<8x64xf32, #tpu.memory_space<vmem>>, vector<8x32xf32>
    tpu.vector_store %arg10[%c0_22, %c32], %60 {strides = array<i32>} : memref<8x64xf32, #tpu.memory_space<vmem>>, vector<8x32xf32>,
    return
  }
  func.func @transform_0(%arg0: i32) -> (i32, i32) {
    %c0_i32 = arith.constant 0 : i32
    %c0_i32_0 = arith.constant 0 : i32
    return %arg0, %c0_i32 : i32, i32
  }
  func.func @transform_1(%arg0: i32) -> (i32, i32) {
    %c0_i32 = arith.constant 0 : i32
    %c0_i32_0 = arith.constant 0 : i32
    return %arg0, %c0_i32 : i32, i32
  }
  func.func @transform_2(%arg0: i32) -> (i32, i32) {
    %c0_i32 = arith.constant 0 : i32
    %c0_i32_0 = arith.constant 0 : i32
    %c0_i32_1 = arith.constant 0 : i32
    return %c0_i32, %c0_i32_0 : i32, i32
  }
  func.func @transform_3(%arg0: i32) -> (i32, i32) {
    %c0_i32 = arith.constant 0 : i32
    %c0_i32_0 = arith.constant 0 : i32
    %c0_i32_1 = arith.constant 0 : i32
    return %c0_i32, %c0_i32_0 : i32, i32
  }
  func.func @transform_4(%arg0: i32) -> (i32, i32) {
    %c0_i32 = arith.constant 0 : i32
    %c0_i32_0 = arith.constant 0 : i32
    %c0_i32_1 = arith.constant 0 : i32
    return %c0_i32, %c0_i32_0 : i32, i32
  }
  func.func @transform_5(%arg0: i32) -> (i32, i32) {
    %c0_i32 = arith.constant 0 : i32
    %c0_i32_0 = arith.constant 0 : i32
    %c0_i32_1 = arith.constant 0 : i32
    return %c0_i32, %c0_i32_0 : i32, i32
  }
  func.func @transform_6(%arg0: i32) -> (i32, i32) {
    %c0_i32 = arith.constant 0 : i32
    %c0_i32_0 = arith.constant 0 : i32
    %c0_i32_1 = arith.constant 0 : i32
    return %c0_i32, %c0_i32_0 : i32, i32
  }
  func.func @transform_7(%arg0: i32) -> (i32, i32) {
    %c0_i32 = arith.constant 0 : i32
    %c0_i32_0 = arith.constant 0 : i32
    %c0_i32_1 = arith.constant 0 : i32
    return %c0_i32, %c0_i32_0 : i32, i32
  }
  func.func @transform_8(%arg0: i32) -> (i32, i32) {
    %c0_i32 = arith.constant 0 : i32
    %c0_i32_0 = arith.constant 0 : i32
    %c0_i32_1 = arith.constant 0 : i32
    return %c0_i32, %c0_i32_0 : i32, i32
  }
  func.func @transform_9(%arg0: i32) -> (i32, i32) {
    %c0_i32 = arith.constant 0 : i32
    %c0_i32_0 = arith.constant 0 : i32
    return %arg0, %c0_i32 : i32, i32
  }
}

</mosaic_0001>

<llo_original>
// kernel: human_obstacle_edge_rnn.1
$region0: #{human_obstacle_edge_rnn.1}
  #allocation0 [shape = 'u32[]', space=smem, size = 0x4, offset = 0x4, fixed_abs, tag = 'smem constant byte address 0x4 - core index']
  #allocation1 [shape = 'u32[144,128]{1,0:T(1,128)}', space=vmem, size = 0x12000, scoped, tag = 'internal scratch']
  %s0 = inlined_call_operand.vmem [shape: f32[8,4], index: 0, kind: input, shape index: {}]
  %s1 = inlined_call_operand.vmem [shape: f32[8,64], index: 1, kind: input, shape index: {}, may-alias: {1,9}]
  %s2 = inlined_call_operand.vmem [shape: f32[4,32], index: 2, kind: input, shape index: {}]
  %s3 = inlined_call_operand.vmem [shape: f32[1,32], index: 3, kind: input, shape index: {}]
  %s4 = inlined_call_operand.vmem [shape: bf16[32,128], index: 4, kind: input, shape index: {}]
  %s5 = inlined_call_operand.vmem [shape: bf16[32,128], index: 5, kind: input, shape index: {}]
  %s6 = inlined_call_operand.vmem [shape: f32[1,128], index: 6, kind: input, shape index: {}]
  %s7 = inlined_call_operand.vmem [shape: f32[1,128], index: 7, kind: input, shape index: {}]
  %s8 = inlined_call_operand.vmem [shape: f32[1,128], index: 8, kind: input, shape index: {}]
  %s9 = inlined_call_operand.vmem [shape: f32[8,64], index: 9, kind: output, shape index: {}, may-alias: {1,9}]
  %s10 = sld [smem:[#allocation0]]
  $region46: #{human_obstacle_edge_rnn.1} parent=0
    _
  %s12 = ssub.s32 1, %s10
  %s13 = scalar_select 0, %s12, %s10
  // Predicated region
  $region2: #{human_obstacle_edge_rnn.1} parent=0 // pred_check
    _
  $region3: #{human_obstacle_edge_rnn.1} parent=0 // pred_check_branch
    %15 = sbr.rel (0) target = $region5
  $region4: #{human_obstacle_edge_rnn.1} parent=0 // pred_region
    _
  $region5: #{human_obstacle_edge_rnn.1} parent=0 // pred_fallthru
    _
  // Predicated region
  $region6: #{human_obstacle_edge_rnn.1} parent=0 // pred_check
    _
  $region7: #{human_obstacle_edge_rnn.1} parent=0 // pred_check_branch
    %17 = sbr.rel (0) target = $region9
  $region8: #{human_obstacle_edge_rnn.1} parent=0 // pred_region
    _
  $region9: #{human_obstacle_edge_rnn.1} parent=0 // pred_fallthru
    _
  // Predicated region
  $region10: #{human_obstacle_edge_rnn.1} parent=0 // pred_check
    _
  $region11: #{human_obstacle_edge_rnn.1} parent=0 // pred_check_branch
    %19 = sbr.rel (0) target = $region13
  $region12: #{human_obstacle_edge_rnn.1} parent=0 // pred_region
    _
  $region13: #{human_obstacle_edge_rnn.1} parent=0 // pred_fallthru
    _
  // Predicated region
  $region14: #{human_obstacle_edge_rnn.1} parent=0 // pred_check
    _
  $region15: #{human_obstacle_edge_rnn.1} parent=0 // pred_check_branch
    %21 = sbr.rel (0) target = $region17
  $region16: #{human_obstacle_edge_rnn.1} parent=0 // pred_region
    _
  $region17: #{human_obstacle_edge_rnn.1} parent=0 // pred_fallthru
    _
  // Predicated region
  $region18: #{human_obstacle_edge_rnn.1} parent=0 // pred_check
    _
  $region19: #{human_obstacle_edge_rnn.1} parent=0 // pred_check_branch
    %23 = sbr.rel (0) target = $region21
  $region20: #{human_obstacle_edge_rnn.1} parent=0 // pred_region
    _
  $region21: #{human_obstacle_edge_rnn.1} parent=0 // pred_fallthru
    _
  // Predicated region
  $region22: #{human_obstacle_edge_rnn.1} parent=0 // pred_check
    _
  $region23: #{human_obstacle_edge_rnn.1} parent=0 // pred_check_branch
    %25 = sbr.rel (0) target = $region25
  $region24: #{human_obstacle_edge_rnn.1} parent=0 // pred_region
    _
  $region25: #{human_obstacle_edge_rnn.1} parent=0 // pred_fallthru
    _
  // Predicated region
  $region26: #{human_obstacle_edge_rnn.1} parent=0 // pred_check
    _
  $region27: #{human_obstacle_edge_rnn.1} parent=0 // pred_check_branch
    %27 = sbr.rel (0) target = $region29
  $region28: #{human_obstacle_edge_rnn.1} parent=0 // pred_region
    _
  $region29: #{human_obstacle_edge_rnn.1} parent=0 // pred_fallthru
    _
  // Predicated region
  $region30: #{human_obstacle_edge_rnn.1} parent=0 // pred_check
    _
  $region31: #{human_obstacle_edge_rnn.1} parent=0 // pred_check_branch
    %29 = sbr.rel (0) target = $region33
  $region32: #{human_obstacle_edge_rnn.1} parent=0 // pred_region
    _
  $region33: #{human_obstacle_edge_rnn.1} parent=0 // pred_fallthru
    _
  // Predicated region
  $region34: #{human_obstacle_edge_rnn.1} parent=0 // pred_check
    _
  $region35: #{human_obstacle_edge_rnn.1} parent=0 // pred_check_branch
    %31 = sbr.rel (0) target = $region37
  $region36: #{human_obstacle_edge_rnn.1} parent=0 // pred_region
    _
  $region37: #{human_obstacle_edge_rnn.1} parent=0 // pred_fallthru
    _
  %v33 = vld [vmem:[%s0] sm:$0xff]
  %v34 = vld [vmem:[%s2] sm:$0xf]
  %36 = vset.pattern.permute.xlu0 0
  %37 = vperm.xlu0 %36, %v33
  %v38 = vpop.permute.xlu0 %37
  %v40 = vlaneseq
  %v41 = vshrl.u32 %v40, 7
  %v42 = vsub.s32 0, %v41
  %v43 = vrot.slane %v34, %v42
  %v44 = vmul.f32 %v38, %v43
  %45 = vset.pattern.permute.xlu0 1
  %46 = vperm.xlu0 %45, %v33
  %v47 = vpop.permute.xlu0 %46
  %v49 = vlaneseq
  %v50 = vshrl.u32 %v49, 7
  %v51 = vsub.s32 1, %v50
  %v52 = vrot.slane %v34, %v51
  %v53 = vmul.f32 %v47, %v52
  %v54 = vadd.f32 %v44, %v53
  %55 = vset.pattern.permute.xlu0 2
  %56 = vperm.xlu0 %55, %v33
  %v57 = vpop.permute.xlu0 %56
  %v59 = vlaneseq
  %v60 = vshrl.u32 %v59, 7
  %v61 = vsub.s32 2, %v60
  %v62 = vrot.slane %v34, %v61
  %v63 = vmul.f32 %v57, %v62
  %v64 = vadd.f32 %v54, %v63
  %65 = vset.pattern.permute.xlu0 3
  %66 = vperm.xlu0 %65, %v33
  %v67 = vpop.permute.xlu0 %66
  %v69 = vlaneseq
  %v70 = vshrl.u32 %v69, 7
  %v71 = vsub.s32 3, %v70
  %v72 = vrot.slane %v34, %v71
  %v73 = vmul.f32 %v67, %v72
  %v74 = vadd.f32 %v64, %v73
  %v75 = vld [vmem:[%s3] sm:$0x1]
  %v77 = vlaneseq
  %v78 = vshrl.u32 %v77, 7
  %v79 = vsub.s32 0, %v78
  %v80 = vrot.slane %v75, %v79
  %v82 = vadd.f32 %v74, %v80
  %v83 = vmax.f32 %v82, 0.0
  %v84 = vld [vmem:[%s1] sm:$0xff]
  %v85 = vpack.c.bf16 %v83, %v83
  %v86 = vld [vmem:[%s4] sm:$0xf]
  %v87 = vld [vmem:[%s4 + $0x4] sm:$0xf]
  %v88 = vld [vmem:[%s4 + $0x8] sm:$0xf]
  %v89 = vld [vmem:[%s4 + $0xc] sm:$0xf]
  %v90 = vpack.c.bf16 %v84, %v84
  %v91 = vld [vmem:[%s5] sm:$0xf]
  %v92 = vld [vmem:[%s5 + $0x4] sm:$0xf]
  %v93 = vld [vmem:[%s5 + $0x8] sm:$0xf]
  %v94 = vld [vmem:[%s5 + $0xc] sm:$0xf]
  %v99 = vunpack.c.l.b16 %v91
  %v100 = vunpack.c.l.b16 %v92
  %v101 = vunpack.c.l.b16 %v93
  %v102 = vunpack.c.l.b16 %v94
  %v103 = vpack.c.b16 %v100, %v99
  %v104 = vpack.c.b16 %v102, %v101
  %vm107 = vcmask 261120
  %v109 = vsel %vm107, %v90, 0
  %111 = vmatprep.subr.bf16.mxu0 0
  %112 = vmatpush1.bf16.msra.mxu0 %v103
  %113 = vmatprep.subr.bf16.mxu0 0
  %114 = vmatpush1.bf16.msra.mxu0 %v104
  %115 = vmatprep.subr.bf16.mxu0 0
  %116 = vmatpush1.bf16.msra.mxu0 0
  %117 = vmatprep.subr.bf16.mxu0 0
  %118 = vmatpush1.bf16.msra.mxu0 0
  %119 = vmatprep.subr.bf16.mxu0 0
  %120 = vmatpush1.bf16.msra.mxu0 0
  %121 = vmatprep.subr.bf16.mxu0 0
  %122 = vmatpush1.bf16.msra.mxu0 0
  %123 = vmatprep.subr.bf16.mxu0 0
  %124 = vmatpush1.bf16.msra.mxu0 0
  %125 = vmatprep.subr.bf16.mxu0 0
  %126 = vmatpush1.bf16.msra.mxu0 0
  %127 = vmatprep.subr.bf16.mxu0 0
  %128 = vmatpush1.bf16.msra.mxu0 0
  %129 = vmatprep.subr.bf16.mxu0 0
  %130 = vmatpush1.bf16.msra.mxu0 0
  %131 = vmatprep.subr.bf16.mxu0 0
  %132 = vmatpush1.bf16.msra.mxu0 0
  %133 = vmatprep.subr.bf16.mxu0 0
  %134 = vmatpush1.bf16.msra.mxu0 0
  %135 = vmatprep.subr.bf16.mxu0 0
  %136 = vmatpush1.bf16.msra.mxu0 0
  %137 = vmatprep.subr.bf16.mxu0 0
  %138 = vmatpush1.bf16.msra.mxu0 0
  %139 = vmatprep.subr.bf16.mxu0 0
  %140 = vmatpush1.bf16.msra.mxu0 0
  %141 = vmatprep.subr.bf16.mxu0 0
  %142 = vmatpush1.bf16.msra.mxu0 0
  %143 = vmatprep.mubr.bf16.mxu0 0
  %144 = vmatmul.mubr.bf16.gmra.mrb[0].mxu0 %v109
  %v145 = vpop.f32.mrb[0].mxu0
  %v146 = vadd.f32 0.0, %v145
  %v147 = vpop.f32.mrb[0].mxu0
  %v148 = vpop.f32.mrb[0].mxu0
  %v149 = vpop.f32.mrb[0].mxu0
  %150 = vdwg.mxu0
  %v155 = vunpack.c.l.b16 %v86
  %v156 = vunpack.c.l.b16 %v87
  %v157 = vunpack.c.l.b16 %v88
  %v158 = vunpack.c.l.b16 %v89
  %v159 = vpack.c.b16 %v156, %v155
  %v160 = vpack.c.b16 %v158, %v157
  %v164 = vsel %vm107, %v85, 0
  %166 = vmatprep.subr.bf16.mxu0 0
  %167 = vmatpush1.bf16.msra.mxu0 %v159
  %168 = vmatprep.subr.bf16.mxu0 0
  %169 = vmatpush1.bf16.msra.mxu0 %v160
  %170 = vmatprep.subr.bf16.mxu0 0
  %171 = vmatpush1.bf16.msra.mxu0 0
  %172 = vmatprep.subr.bf16.mxu0 0
  %173 = vmatpush1.bf16.msra.mxu0 0
  %174 = vmatprep.subr.bf16.mxu0 0
  %175 = vmatpush1.bf16.msra.mxu0 0
  %176 = vmatprep.subr.bf16.mxu0 0
  %177 = vmatpush1.bf16.msra.mxu0 0
  %178 = vmatprep.subr.bf16.mxu0 0
  %179 = vmatpush1.bf16.msra.mxu0 0
  %180 = vmatprep.subr.bf16.mxu0 0
  %181 = vmatpush1.bf16.msra.mxu0 0
  %182 = vmatprep.subr.bf16.mxu0 0
  %183 = vmatpush1.bf16.msra.mxu0 0
  %184 = vmatprep.subr.bf16.mxu0 0
  %185 = vmatpush1.bf16.msra.mxu0 0
  %186 = vmatprep.subr.bf16.mxu0 0
  %187 = vmatpush1.bf16.msra.mxu0 0
  %188 = vmatprep.subr.bf16.mxu0 0
  %189 = vmatpush1.bf16.msra.mxu0 0
  %190 = vmatprep.subr.bf16.mxu0 0
  %191 = vmatpush1.bf16.msra.mxu0 0
  %192 = vmatprep.subr.bf16.mxu0 0
  %193 = vmatpush1.bf16.msra.mxu0 0
  %194 = vmatprep.subr.bf16.mxu0 0
  %195 = vmatpush1.bf16.msra.mxu0 0
  %196 = vmatprep.subr.bf16.mxu0 0
  %197 = vmatpush1.bf16.msra.mxu0 0
  %198 = vmatprep.mubr.bf16.mxu0 0
  %199 = vmatmul.mubr.bf16.gmra.mrb[0].mxu0 %v164
  %v200 = vpop.f32.mrb[0].mxu0
  %v201 = vadd.f32 %v146, %v200
  %v202 = vpop.f32.mrb[0].mxu0
  %v203 = vpop.f32.mrb[0].mxu0
  %v204 = vpop.f32.mrb[0].mxu0
  %205 = vdwg.mxu0
  %v206 = vld [vmem:[%s6] sm:$0x1]
  %v208 = vlaneseq
  %v209 = vshrl.u32 %v208, 7
  %v210 = vsub.s32 0, %v209
  %v211 = vrot.slane %v206, %v210
  %v213 = vadd.f32 %v201, %v211
  %v214 = vxor.u32 %v213, 2147483648
  %v215 = vmul.f32 %v214, 1.442695
  %v216 = vpow.pop %v215
  %v217 = vadd.f32 %v216, 1.0
  %v218 = vrcp.pop %v217
  %v219 = vmul.f32 1.0, %v218
  %v220 = vld [vmem:[%s7] sm:$0x1]
  %v222 = vlaneseq
  %v223 = vshrl.u32 %v222, 7
  %v224 = vsub.s32 0, %v223
  %v225 = vrot.slane %v220, %v224
  %v227 = vmul.f32 %v219, %v225
  %v228 = vld [vmem:[%s8] sm:$0x1]
  %v230 = vlaneseq
  %v231 = vshrl.u32 %v230, 7
  %v232 = vsub.s32 0, %v231
  %v233 = vrot.slane %v228, %v232
  %v235 = vadd.f32 %v227, %v233
  %v236 = vmul.f32 %v235, %v84
  %238 = vrot.lane.b32.xlu0 %v235, 64
  %v239 = vpop.permute.xlu0 %238
  %v241 = vmul.f32 %v235, %v239
  %243 = vrot.lane.b32.xlu0 %v241, 32
  %v244 = vpop.permute.xlu0 %243
  %v246 = vadd.f32 %v236, %v244
  %v247 = vtanh.pop %v246
  %249 = vrot.lane.b32.xlu0 %v247, 64
  %v250 = vpop.permute.xlu0 %249
  %v252 = vmul.f32 %v235, %v250
  %254 = vrot.lane.b32.xlu0 %v252, 32
  %v255 = vpop.permute.xlu0 %254
  %257 = vst.msk [vmem:[%s9] sm:$0xff] %vm107, %v255
  %vm258 = vcmask 523520
  %259 = vst.msk [vmem:[%s9] sm:$0xff] %vm258, %v246
  // Predicated region
  $region38: #{human_obstacle_edge_rnn.1} parent=0 // pred_check
    _
  $region39: #{human_obstacle_edge_rnn.1} parent=0 // pred_check_branch
    %261 = sbr.rel (0) target = $region41
  $region40: #{human_obstacle_edge_rnn.1} parent=0 // pred_region
    _
  $region41: #{human_obstacle_edge_rnn.1} parent=0 // pred_fallthru
    _
  // Predicated region
  $region42: #{human_obstacle_edge_rnn.1} parent=0 // pred_check
    _
  $region43: #{human_obstacle_edge_rnn.1} parent=0 // pred_check_branch
    %263 = sbr.rel (0) target = $region45
  $region44: #{human_obstacle_edge_rnn.1} parent=0 // pred_region
    _
  $region45: #{human_obstacle_edge_rnn.1} parent=0 // pred_fallthru
    _

</llo_original>
